<compile_context>
chip_gen: v6e
topology: v6e:2x2x1
jax: 0.10.0
libtpu: 0.0.40
codegen_flags: <defaults>
</compile_context>

<pallas_src>
import functools

import jax
import jax.numpy as jnp
from jax.experimental import pallas as pl
from jax.experimental.pallas import tpu as pltpu


def _conv_bn_relu_kernel(x_ref, w_ref, bias_ref, out_ref, *,
                         tap_offsets, q_store):
    """One image per grid step.

    x_ref:    (1, C_in, HW_ext)    flattened, zero-padded image (+ tail slack)
    w_ref:    (C_out, K)           BN-scale folded weights, K = KH*KW*C_in
    bias_ref: (C_out, 1)           folded BN bias
    out_ref:  (1, C_out, q_store)  dense stride-1 output, q_store = OH1*W_pad
    """
    xf = x_ref[0]                                          # (C_in, HW_ext)
    # Transposed patch matrix built in VMEM from contiguous lane slices
    # (one per kernel tap); no patch tensor ever touches HBM.
    slabs = [xf[:, off:off + q_store] for off in tap_offsets]
    patches_t = jnp.concatenate(slabs, axis=0)             # (K, q_store)
    acc = jnp.dot(w_ref[...], patches_t,
                  preferred_element_type=jnp.float32)      # (C_out, q_store)
    y = acc + bias_ref[...]                                # per-channel bias
    out_ref[0] = jnp.maximum(y, 0.0).astype(out_ref.dtype)


@functools.partial(jax.jit, static_argnames=("stride", "padding"))
def conv_layer_forward(x, conv_w, gamma, beta, running_mean, running_var,
                       *, stride=1, padding=0, eps=1e-5):
    """Fused conv + bn(eval) + relu.  x: NCHW, conv_w: (C_out, C_in, KH, KW)."""
    n, c_in, h, w = x.shape
    c_out, c_in_w, kh, kw = conv_w.shape
    assert c_in_w == c_in, "groups > 1 not supported"  # TODO(synk): groups

    h_pad = h + 2 * padding
    w_pad = w + 2 * padding
    oh1 = h_pad - kh + 1                    # dense (stride-1) output height
    ow1 = w_pad - kw + 1
    oh = (h_pad - kh) // stride + 1         # requested (strided) output size
    ow = (w_pad - kw) // stride + 1

    q_store = oh1 * w_pad                   # lane-dense output width per image
    hw_ext = h_pad * w_pad + (kw - 1)       # flat image + tiny tail slack

    # Zero-pad spatially, flatten spatial dims, add tail slack (single pass,
    # stays in NCHW -> no layout transpose of the activations).
    x_pad = jnp.pad(x, ((0, 0), (0, 0),
                        (padding, padding), (padding, padding)))
    xf = x_pad.reshape(n, c_in, h_pad * w_pad)
    xf = jnp.pad(xf, ((0, 0), (0, 0), (0, kw - 1)))

    # Fold BN (inference mode) into the weights; only bias stays in the kernel.
    inv_std = 1.0 / jnp.sqrt(running_var + eps)
    scale = gamma * inv_std                                  # (C_out,)
    bias = (beta - running_mean * scale).reshape(c_out, 1)
    # (C_out, C_in, KH, KW) -> (C_out, KH, KW, C_in) -> (C_out, K); the K
    # ordering (tap-major, channel-minor) matches the slab stacking above.
    w_t = (jnp.transpose(conv_w, (0, 2, 3, 1)).reshape(c_out, kh * kw * c_in)
           * scale[:, None])

    tap_offsets = tuple(i * w_pad + j for i in range(kh) for j in range(kw))
    k_dim = kh * kw * c_in

    kernel = functools.partial(_conv_bn_relu_kernel,
                               tap_offsets=tap_offsets, q_store=q_store)

    out_mat = pl.pallas_call(
        kernel,
        out_shape=jax.ShapeDtypeStruct((n, c_out, q_store), x.dtype),
        grid_spec=pltpu.PrefetchScalarGridSpec(
            num_scalar_prefetch=0,
            grid=(n,),
            in_specs=[
                pl.BlockSpec((1, c_in, hw_ext), lambda b: (b, 0, 0)),
                pl.BlockSpec((c_out, k_dim), lambda b: (0, 0)),
                pl.BlockSpec((c_out, 1), lambda b: (0, 0)),
            ],
            out_specs=pl.BlockSpec((1, c_out, q_store), lambda b: (b, 0, 0)),
        ),
        compiler_params=pltpu.CompilerParams(
            dimension_semantics=("parallel",),
            vmem_limit_bytes=32 * 1024 * 1024),
    )(xf, w_t, bias)

    # (N, C_out, OH1*W_pad) -> (N, C_out, OH1, W_pad) is a free reshape; then
    # trim the garbage (width-pad) columns and apply the stride subsample.
    dense = out_mat.reshape(n, c_out, oh1, w_pad)
    return dense[:, :, 0:oh1:stride, 0:ow1:stride][:, :, :oh, :ow]


def _reference_forward(x, conv_w, gamma, beta, running_mean, running_var,
                       *, stride, padding, eps=1e-5):
    y = jax.lax.conv_general_dilated(
        x, conv_w, window_strides=(stride, stride),
        padding=[(padding, padding), (padding, padding)],
        dimension_numbers=("NCHW", "OIHW", "NCHW"))
    scale = (gamma / jnp.sqrt(running_var + eps)).reshape(1, -1, 1, 1)
    bias = (beta - running_mean * gamma / jnp.sqrt(running_var + eps)
            ).reshape(1, -1, 1, 1)
    return jnp.maximum(y * scale + bias, 0.0)


if __name__ == "__main__":
    # ConvLayer(in_channels=4, out_channels=8, kernel_size=3, stride=1, padding=1)
    N, C_IN, H, W = 2, 4, 16, 16
    C_OUT, KH, KW = 8, 3, 3
    STRIDE, PADDING = 1, 1

    key = jax.random.PRNGKey(0)
    kx, kw_, kg, kb, km, kv = jax.random.split(key, 6)

    x = jax.random.normal(kx, (N, C_IN, H, W), dtype=jnp.float32)
    # Deterministic "kaiming-like" init for the conv weight.
    fan_in = C_IN * KH * KW
    conv_w = jax.random.normal(kw_, (C_OUT, C_IN, KH, KW),
                               dtype=jnp.float32) * (2.0 / fan_in) ** 0.5
    gamma = 1.0 + 0.1 * jax.random.normal(kg, (C_OUT,), dtype=jnp.float32)
    beta = 0.1 * jax.random.normal(kb, (C_OUT,), dtype=jnp.float32)
    running_mean = 0.1 * jax.random.normal(km, (C_OUT,), dtype=jnp.float32)
    running_var = 1.0 + 0.1 * jax.random.uniform(kv, (C_OUT,),
                                                 dtype=jnp.float32)

    out = conv_layer_forward(x, conv_w, gamma, beta, running_mean, running_var,
                             stride=STRIDE, padding=PADDING)
    out = jax.block_until_ready(out)

    ref = _reference_forward(x, conv_w, gamma, beta, running_mean, running_var,
                             stride=STRIDE, padding=PADDING)
    assert out.shape == (N, C_OUT, H, W), out.shape
    assert jnp.allclose(out, ref, atol=1e-4, rtol=1e-4), \
        float(jnp.max(jnp.abs(out - ref)))
    print("KERNEL_OK")
</pallas_src>

<mosaic_0001>
module attributes {stable_mosaic.version = 11 : i64} {
  func.func @_conv_bn_relu_kernel(%arg0: i32, %arg1: memref<1x4x326xf32, #tpu.memory_space<vmem>>, %arg2: memref<8x36xf32, #tpu.memory_space<vmem>>, %arg3: memref<8x1xf32, #tpu.memory_space<vmem>>, %arg4: memref<1x8x288xf32, #tpu.memory_space<vmem>>) attributes {dimension_semantics = [#tpu.dimension_semantics<parallel>], iteration_bounds = array<i64: 2>, scalar_prefetch = 0 : i64, scratch_operands = 0 : i64, tpu.core_type = #tpu.core_type<tc>, window_params = [{transform_indices = @transform_0, window_bounds = array<i64: 1, 4, 326>}, {pipeline_mode = #tpu.pipeline_mode<synchronous>, transform_indices = @transform_1, window_bounds = array<i64: 8, 36>}, {pipeline_mode = #tpu.pipeline_mode<synchronous>, transform_indices = @transform_2, window_bounds = array<i64: 8, 1>}, {transform_indices = @transform_3, window_bounds = array<i64: 1, 8, 288>}]} {
    %c0 = arith.constant 0 : index
    %c0_0 = arith.constant 0 : index
    %c0_1 = arith.constant 0 : index
    %0 = vector.load %arg1[%c0, %c0_0, %c0_1] : memref<1x4x326xf32, #tpu.memory_space<vmem>>, vector<1x4x326xf32>
    %1 = vector.shape_cast %0 : vector<1x4x326xf32> to vector<4x326xf32>
    %2 = vector.extract_strided_slice %1 {offsets = [0, 0], sizes = [4, 288], strides = [1, 1]} : vector<4x326xf32> to vector<4x288xf32>
    %3 = vector.extract_strided_slice %1 {offsets = [0, 1], sizes = [4, 288], strides = [1, 1]} : vector<4x326xf32> to vector<4x288xf32>
    %4 = vector.extract_strided_slice %1 {offsets = [0, 2], sizes = [4, 288], strides = [1, 1]} : vector<4x326xf32> to vector<4x288xf32>
    %5 = vector.extract_strided_slice %1 {offsets = [0, 18], sizes = [4, 288], strides = [1, 1]} : vector<4x326xf32> to vector<4x288xf32>
    %6 = vector.extract_strided_slice %1 {offsets = [0, 19], sizes = [4, 288], strides = [1, 1]} : vector<4x326xf32> to vector<4x288xf32>
    %7 = vector.extract_strided_slice %1 {offsets = [0, 20], sizes = [4, 288], strides = [1, 1]} : vector<4x326xf32> to vector<4x288xf32>
    %8 = vector.extract_strided_slice %1 {offsets = [0, 36], sizes = [4, 288], strides = [1, 1]} : vector<4x326xf32> to vector<4x288xf32>
    %9 = vector.extract_strided_slice %1 {offsets = [0, 37], sizes = [4, 288], strides = [1, 1]} : vector<4x326xf32> to vector<4x288xf32>
    %10 = vector.extract_strided_slice %1 {offsets = [0, 38], sizes = [4, 288], strides = [1, 1]} : vector<4x326xf32> to vector<4x288xf32>
    %11 = tpu.concatenate %2, %3, %4, %5, %6, %7, %8, %9, %10 in 0 : vector<4x288xf32>, vector<4x288xf32>, vector<4x288xf32>, vector<4x288xf32>, vector<4x288xf32>, vector<4x288xf32>, vector<4x288xf32>, vector<4x288xf32>, vector<4x288xf32> -> vector<36x288xf32>
    %c0_2 = arith.constant 0 : index
    %c0_3 = arith.constant 0 : index
    %12 = vector.load %arg2[%c0_2, %c0_3] : memref<8x36xf32, #tpu.memory_space<vmem>>, vector<8x36xf32>
    %cst = arith.constant dense<0.000000e+00> : vector<8x288xf32>
    %13 = tpu.matmul %12, %11, %cst {dimension_numbers = #tpu.dot_dimension_numbers<[1], [0], [0], [1], [0, 0, 1, 1], [], []>} : vector<8x36xf32>, vector<36x288xf32>, vector<8x288xf32> -> vector<8x288xf32>
    %c0_4 = arith.constant 0 : index
    %c0_5 = arith.constant 0 : index
    %14 = vector.load %arg3[%c0_4, %c0_5] : memref<8x1xf32, #tpu.memory_space<vmem>>, vector<8x1xf32>
    %15 = vector.broadcast %14 : vector<8x1xf32> to vector<8x288xf32>
    %16 = arith.addf %13, %15 : vector<8x288xf32>
    %cst_6 = arith.constant 0.000000e+00 : f32
    %17 = vector.broadcast %cst_6 : f32 to vector<8x288xf32>
    %18 = arith.maximumf %16, %17 : vector<8x288xf32>
    %c0_7 = arith.constant 0 : index
    %c0_8 = arith.constant 0 : index
    %c0_9 = arith.constant 0 : index
    %19 = vector.load %arg4[%c0_7, %c0_8, %c0_9] : memref<1x8x288xf32, #tpu.memory_space<vmem>>, vector<1x8x288xf32>
    %20 = vector.shape_cast %19 : vector<1x8x288xf32> to vector<8x288xf32>
    %21 = vector.shape_cast %18 : vector<8x288xf32> to vector<1x8x288xf32>
    tpu.vector_store %arg4[%c0_7, %c0_8, %c0_9], %21 {strides = array<i32>} : memref<1x8x288xf32, #tpu.memory_space<vmem>>, vector<1x8x288xf32>,
    return
  }
  func.func @transform_0(%arg0: i32) -> (i32, i32, i32) {
    %c0_i32 = arith.constant 0 : i32
    %c0_i32_0 = arith.constant 0 : i32
    %c0_i32_1 = arith.constant 0 : i32
    return %arg0, %c0_i32, %c0_i32_0 : i32, i32, i32
  }
  func.func @transform_1(%arg0: i32) -> (i32, i32) {
    %c0_i32 = arith.constant 0 : i32
    %c0_i32_0 = arith.constant 0 : i32
    %c0_i32_1 = arith.constant 0 : i32
    return %c0_i32, %c0_i32_0 : i32, i32
  }
  func.func @transform_2(%arg0: i32) -> (i32, i32) {
    %c0_i32 = arith.constant 0 : i32
    %c0_i32_0 = arith.constant 0 : i32
    %c0_i32_1 = arith.constant 0 : i32
    return %c0_i32, %c0_i32_0 : i32, i32
  }
  func.func @transform_3(%arg0: i32) -> (i32, i32, i32) {
    %c0_i32 = arith.constant 0 : i32
    %c0_i32_0 = arith.constant 0 : i32
    %c0_i32_1 = arith.constant 0 : i32
    return %arg0, %c0_i32, %c0_i32_0 : i32, i32, i32
  }
}

</mosaic_0001>

<llo_original>
// kernel: conv_layer_forward.1
$region0: #{conv_layer_forward.1}
  #allocation0 [shape = 'u32[]', space=smem, size = 0x4, offset = 0x4, fixed_abs, tag = 'smem constant byte address 0x4 - core index']
  #allocation1 [shape = 'u32[144,128]{1,0:T(1,128)}', space=vmem, size = 0x12000, scoped, tag = 'internal scratch']
  %s0 = inlined_call_operand.vmem [shape: f32[2,4,326], index: 0, kind: input, shape index: {}]
  %s1 = inlined_call_operand.vmem [shape: f32[8,36], index: 1, kind: input, shape index: {}]
  %s2 = inlined_call_operand.vmem [shape: f32[8,1], index: 2, kind: input, shape index: {}]
  %s3 = inlined_call_operand.vmem [shape: f32[2,8,288], index: 3, kind: output, shape index: {}]
  %s4 = sld [smem:[#allocation0]]
  $region45: #{conv_layer_forward.1} parent=0
    _
  %s6 = ssub.s32 1, %s4
  %s7 = scalar_select 0, %s6, %s4
  loop: start=0, step=1, limit=4
  $region2: #{conv_layer_forward.1} parent=0 // loop_pre_header
    _
  $region3: #{conv_layer_forward.1} parent=0 // loop_header
    %s9 = sphi 0, %s13
    %p10 = scmp.ge.s32.totalorder %s9, 4
    %s19 = sphi 0, %s21
    %s22 = sphi 0, %s19
    %s23 = sphi 0, %s22
    %s39 = sphi 0, %s23
    %s43 = sphi 0, %s43
    %s45 = sphi 0, %s43
    %s46 = sphi 0, %s45
    %s60 = sphi 0, %s46
    %s64 = sphi 0, %s64
    %s66 = sphi 0, %s64
    %s67 = sphi 0, %s66
    %s81 = sphi 0, %s67
    %s87 = sphi 0, %s89
    %s90 = sphi 0, %s87
    %s91 = sphi 0, %s90
    %s107 = sphi 0, %s91
  $region4: #{conv_layer_forward.1} parent=0 // loop_header_branch
    %12 = sbr.rel (%p10) target = $region8
  $region5: #{conv_layer_forward.1} parent=0 // loop_body
    %s14 = ssub.s32 %s9, 1
    %s15 = ssub.s32 %s9, 2
    %s16 = sadd.s32 %s9, 1
    %s17 = ssub.s32 %s9, %s16
    %p18 = scmp.eq.s32.totalorder %s17, 0
    %s20 = sadd.s32 %s19, 1
    %s21 = scalar_select %p18, %s19, %s20
    %p24 = pneg %p18
    %p25 = scmp.eq.s32.totalorder %s9, 1
    %p26 = por %p24, %p25
    %p27 = scmp.ne.s32.totalorder %s19, %s22
    %p28 = scmp.eq.s32.totalorder %s9, 0
    %p29 = por %p27, %p28
    %p30 = scmp.ne.s32.totalorder %s19, %s22
    %p31 = scmp.eq.s32.totalorder %s14, 1
    %p32 = por %p30, %p31
    %p33 = scmp.ne.s32.totalorder %s22, %s23
    %p34 = scmp.eq.s32.totalorder %s14, 0
    %p35 = por %p33, %p34
    %p36 = scmp.ne.s32.totalorder %s22, %s23
    %p37 = scmp.eq.s32.totalorder %s15, 1
    %p38 = por %p36, %p37
    %p40 = scmp.ne.s32.totalorder %s23, %s39
    %p41 = scmp.eq.s32.totalorder %s15, 0
    %p42 = por %p40, %p41
    %s44 = sadd.s32 %s43, 1
    %p47 = scmp.eq.s32.totalorder %s9, 1
    %p48 = scmp.ne.s32.totalorder %s43, %s45
    %p49 = scmp.eq.s32.totalorder %s9, 0
    %p50 = por %p48, %p49
    %p51 = scmp.ne.s32.totalorder %s43, %s45
    %p52 = scmp.eq.s32.totalorder %s14, 1
    %p53 = por %p51, %p52
    %p54 = scmp.ne.s32.totalorder %s45, %s46
    %p55 = scmp.eq.s32.totalorder %s14, 0
    %p56 = por %p54, %p55
    %p57 = scmp.ne.s32.totalorder %s45, %s46
    %p58 = scmp.eq.s32.totalorder %s15, 1
    %p59 = por %p57, %p58
    %p61 = scmp.ne.s32.totalorder %s46, %s60
    %p62 = scmp.eq.s32.totalorder %s15, 0
    %p63 = por %p61, %p62
    %s65 = sadd.s32 %s64, 1
    %p68 = scmp.eq.s32.totalorder %s9, 1
    %p69 = scmp.ne.s32.totalorder %s64, %s66
    %p70 = scmp.eq.s32.totalorder %s9, 0
    %p71 = por %p69, %p70
    %p72 = scmp.ne.s32.totalorder %s64, %s66
    %p73 = scmp.eq.s32.totalorder %s14, 1
    %p74 = por %p72, %p73
    %p75 = scmp.ne.s32.totalorder %s66, %s67
    %p76 = scmp.eq.s32.totalorder %s14, 0
    %p77 = por %p75, %p76
    %p78 = scmp.ne.s32.totalorder %s66, %s67
    %p79 = scmp.eq.s32.totalorder %s15, 1
    %p80 = por %p78, %p79
    %p82 = scmp.ne.s32.totalorder %s67, %s81
    %p83 = scmp.eq.s32.totalorder %s15, 0
    %p84 = por %p82, %p83
    %s85 = ssub.s32 %s9, %s16
    %p86 = scmp.eq.s32.totalorder %s85, 0
    %s88 = sadd.s32 %s87, 1
    %s89 = scalar_select %p86, %s87, %s88
    %p92 = pneg %p86
    %p93 = scmp.eq.s32.totalorder %s9, 1
    %p94 = por %p92, %p93
    %p95 = scmp.ne.s32.totalorder %s87, %s90
    %p96 = scmp.eq.s32.totalorder %s9, 0
    %p97 = por %p95, %p96
    %p98 = scmp.ne.s32.totalorder %s87, %s90
    %p99 = scmp.eq.s32.totalorder %s14, 1
    %p100 = por %p98, %p99
    %p101 = scmp.ne.s32.totalorder %s90, %s91
    %p102 = scmp.eq.s32.totalorder %s14, 0
    %p103 = por %p101, %p102
    %p104 = scmp.ne.s32.totalorder %s90, %s91
    %p105 = scmp.eq.s32.totalorder %s15, 1
    %p106 = por %p104, %p105
    %p108 = scmp.ne.s32.totalorder %s91, %s107
    %p109 = scmp.eq.s32.totalorder %s15, 0
    %p110 = por %p108, %p109
    %p111 = scmp.le.s32.totalorder 1, %s9
    %p112 = scmp.lt.s32.totalorder %s9, 3
    %p113 = pnand %p111, %p112
    %p114 = pneg %p113
    // Predicated region
    $region9: #{conv_layer_forward.1} parent=5 // pred_check
      _
    $region10: #{conv_layer_forward.1} parent=5 // pred_check_branch
      %116 = sbr.rel (%p113) target = $region12
    $region11: #{conv_layer_forward.1} parent=5 // pred_region
      %s117 = ssub.s32 %s9, 1
      // Predicated region
      $region13: #{conv_layer_forward.1} parent=11 // pred_check
        %p118 = pneg %p56
      $region14: #{conv_layer_forward.1} parent=11 // pred_check_branch
        %120 = sbr.rel (%p118) target = $region16
      $region15: #{conv_layer_forward.1} parent=11 // pred_region
        _
      $region16: #{conv_layer_forward.1} parent=11 // pred_fallthru
        _
      // Predicated region
      $region17: #{conv_layer_forward.1} parent=11 // pred_check
        %p121 = pneg %p77
      $region18: #{conv_layer_forward.1} parent=11 // pred_check_branch
        %123 = sbr.rel (%p121) target = $region20
      $region19: #{conv_layer_forward.1} parent=11 // pred_region
        _
      $region20: #{conv_layer_forward.1} parent=11 // pred_fallthru
        _
    $region12: #{conv_layer_forward.1} parent=5 // pred_fallthru
      _
    %p124 = scmp.lt.s32.totalorder %s9, 2
    // Predicated region
    $region21: #{conv_layer_forward.1} parent=5 // pred_check
      %p125 = pneg %p124
    $region22: #{conv_layer_forward.1} parent=5 // pred_check_branch
      %127 = sbr.rel (%p125) target = $region24
    $region23: #{conv_layer_forward.1} parent=5 // pred_region
      // Predicated region
      $region25: #{conv_layer_forward.1} parent=23 // pred_check
        %p128 = pneg %p29
      $region26: #{conv_layer_forward.1} parent=23 // pred_check_branch
        %130 = sbr.rel (%p128) target = $region28
      $region27: #{conv_layer_forward.1} parent=23 // pred_region
        %p131 = scmp.lt.s32.totalorder %s9, 1
        %s132 = scalar_select %p131, %s9, 1
        %s133 = smul.addr %s132, 3
        %s134 = smul.addr %s133, 4
        %s135 = scalar_lea.vmem %s0, %s134
      $region28: #{conv_layer_forward.1} parent=23 // pred_fallthru
        _
    $region24: #{conv_layer_forward.1} parent=5 // pred_fallthru
      _
    %p136 = scmp.le.s32.totalorder 1, %s9
    %p137 = scmp.lt.s32.totalorder %s9, 3
    %p138 = pnand %p136, %p137
    %p139 = pneg %p138
    // Predicated region
    $region29: #{conv_layer_forward.1} parent=5 // pred_check
      _
    $region30: #{conv_layer_forward.1} parent=5 // pred_check_branch
      %141 = sbr.rel (%p138) target = $region32
    $region31: #{conv_layer_forward.1} parent=5 // pred_region
      %s142 = ssub.s32 %s9, 1
      %p143 = scmp.lt.s32.totalorder %s14, 1
      %s144 = scalar_select %p143, %s14, 1
      %s145 = smul.addr %s144, 3
      %s146 = smul.addr %s145, 4
      %s147 = scalar_lea.vmem %s0, %s146
      %p148 = pneg %p35
      %p149 = pneg %p32
      %p150 = pneg %p56
      %p151 = pneg %p53
      %p152 = pneg %p77
      %p153 = pneg %p74
      %p154 = pneg %p103
      %p155 = pneg %p100
      %p156 = scmp.lt.s32.totalorder %s14, 1
      %s157 = scalar_select %p156, %s14, 1
      %s158 = smul.addr %s157, 3
      %s159 = smul.addr %s158, 8
      %s160 = scalar_lea.vmem %s3, %s159
      %p161 = scmp.lt.s32.totalorder %s14, 1
      %s162 = scalar_select %p161, %s14, 1
      %s163 = smul.addr %s162, 3
      %s164 = smul.addr %s163, 4
      %s165 = scalar_lea.vmem %s0, %s164
      %p166 = scmp.lt.s32.totalorder %s14, 1
      %s167 = scalar_select %p166, %s14, 1
      %s168 = smul.addr %s167, 3
      %s169 = smul.addr %s168, 8
      %s170 = scalar_lea.vmem %s3, %s169
      %v171 = vld [vmem:[%s165] sm:$0xff]
      %v172 = vld [vmem:[%s165 + $0x8] sm:$0xf]
      %v175 = vcombine.high %v171, %v171
      %v177 = vcombine.low %v171, %v171
      %v178 = vcombine.low %v172, %v172
      %179 = vrot.lane.b32.xlu0 %v177, 127
      %v180 = vpop.permute.xlu0 %179
      %181 = vrot.lane.b32.xlu0 %v171, 127
      %v182 = vpop.permute.xlu0 %181
      %183 = vrot.lane.b32.xlu0 %v178, 127
      %v184 = vpop.permute.xlu0 %183
      %vm185 = vcmask 1039360
      %v186 = vsel %vm185, %v180, %v182
      %v187 = vsel %vm185, %v182, %v184
      %191 = vrot.lane.b32.xlu0 %v171, 126
      %v192 = vpop.permute.xlu0 %191
      %193 = vrot.lane.b32.xlu0 %v175, 126
      %v194 = vpop.permute.xlu0 %193
      %195 = vrot.lane.b32.xlu0 %v172, 126
      %v196 = vpop.permute.xlu0 %195
      %vm197 = vcmask 1031168
      %v198 = vsel %vm197, %v192, %v194
      %v199 = vsel %vm197, %v194, %v196
      %203 = vrot.lane.b32.xlu0 %v177, 110
      %v204 = vpop.permute.xlu0 %203
      %205 = vrot.lane.b32.xlu0 %v171, 110
      %v206 = vpop.permute.xlu0 %205
      %207 = vrot.lane.b32.xlu0 %v178, 110
      %v208 = vpop.permute.xlu0 %207
      %vm209 = vcmask 900096
      %v210 = vsel %vm209, %v204, %v206
      %v211 = vsel %vm209, %v206, %v208
      %215 = vrot.lane.b32.xlu0 %v171, 109
      %v216 = vpop.permute.xlu0 %215
      %217 = vrot.lane.b32.xlu0 %v175, 109
      %v218 = vpop.permute.xlu0 %217
      %219 = vrot.lane.b32.xlu0 %v172, 109
      %v220 = vpop.permute.xlu0 %219
      %vm221 = vcmask 891904
      %v222 = vsel %vm221, %v216, %v218
      %v223 = vsel %vm221, %v218, %v220
      %227 = vrot.lane.b32.xlu0 %v177, 108
      %v228 = vpop.permute.xlu0 %227
      %229 = vrot.lane.b32.xlu0 %v171, 108
      %v230 = vpop.permute.xlu0 %229
      %231 = vrot.lane.b32.xlu0 %v178, 108
      %v232 = vpop.permute.xlu0 %231
      %vm233 = vcmask 883712
      %v234 = vsel %vm233, %v228, %v230
      %v235 = vsel %vm233, %v230, %v232
      %239 = vrot.lane.b32.xlu0 %v171, 92
      %v240 = vpop.permute.xlu0 %239
      %241 = vrot.lane.b32.xlu0 %v175, 92
      %v242 = vpop.permute.xlu0 %241
      %243 = vrot.lane.b32.xlu0 %v172, 92
      %v244 = vpop.permute.xlu0 %243
      %vm245 = vcmask 752640
      %v246 = vsel %vm245, %v240, %v242
      %v247 = vsel %vm245, %v242, %v244
      %251 = vrot.lane.b32.xlu0 %v177, 91
      %v252 = vpop.permute.xlu0 %251
      %253 = vrot.lane.b32.xlu0 %v171, 91
      %v254 = vpop.permute.xlu0 %253
      %255 = vrot.lane.b32.xlu0 %v178, 91
      %v256 = vpop.permute.xlu0 %255
      %vm257 = vcmask 744448
      %v258 = vsel %vm257, %v252, %v254
      %v259 = vsel %vm257, %v254, %v256
      %263 = vrot.lane.b32.xlu0 %v171, 90
      %v264 = vpop.permute.xlu0 %263
      %265 = vrot.lane.b32.xlu0 %v175, 90
      %v266 = vpop.permute.xlu0 %265
      %267 = vrot.lane.b32.xlu0 %v172, 90
      %v268 = vpop.permute.xlu0 %267
      %vm269 = vcmask 736256
      %v270 = vsel %vm269, %v264, %v266
      %v271 = vsel %vm269, %v266, %v268
      %vm272 = vcmask 1043456
      %v273 = vsel %vm272, %v171, %v186
      %v274 = vsel %vm272, %v175, %v187
      %v275 = vsel %vm272, %v172, %v184
      %v276 = vsel %vm272, %v198, %v210
      %v277 = vsel %vm272, %v199, %v211
      %v278 = vsel %vm272, %v196, %v208
      %v279 = vsel %vm272, %v222, %v234
      %v280 = vsel %vm272, %v223, %v235
      %v281 = vsel %vm272, %v220, %v232
      %v282 = vsel %vm272, %v246, %v258
      %v283 = vsel %vm272, %v247, %v259
      %v284 = vsel %vm272, %v244, %v256
      %v285 = vld [vmem:[%s1] sm:$0xff]
      %v286 = vld [vmem:[%s2] sm:$0xff]
      %288 = vset.pattern.permute.xlu0 0
      %289 = vperm.xlu0 %288, %v286
      %v290 = vpop.permute.xlu0 %289
      %vm292 = vcmask 293888
      %v294 = vsel %vm292, %v285, 0
      %v296 = vsel %vm272, %v270, 0
      %v298 = vsel %vm272, %v271, 0
      %v300 = vsel %vm272, %v268, 0
      %302 = vmatprep.subr.mxu0 0.0
      %303 = vmatpush1.msra.mxu0 0.0
      %304 = vmatprep.subr.mxu0 0.0
      %305 = vmatpush1.msra.mxu0 0.0
      %306 = vmatprep.subr.mxu0 0.0
      %307 = vmatpush1.msra.mxu0 0.0
      %308 = vmatprep.subr.mxu0 0.0
      %309 = vmatpush1.msra.mxu0 0.0
      %310 = vmatprep.subr.mxu0 0.0
      %311 = vmatpush1.msra.mxu0 0.0
      %312 = vmatprep.subr.mxu0 0.0
      %313 = vmatpush1.msra.mxu0 0.0
      %314 = vmatprep.subr.mxu0 0.0
      %315 = vmatpush1.msra.mxu0 0.0
      %316 = vmatprep.subr.mxu0 0.0
      %317 = vmatpush1.msra.mxu0 0.0
      %318 = vmatprep.subr.mxu0 0.0
      %319 = vmatpush1.msra.mxu0 0.0
      %320 = vmatprep.subr.mxu0 0.0
      %321 = vmatpush1.msra.mxu0 0.0
      %322 = vmatprep.subr.mxu0 0.0
      %323 = vmatpush1.msra.mxu0 0.0
      %324 = vmatprep.subr.mxu0 %v298
      %325 = vmatpush1.msra.mxu0 %v296
      %326 = vmatprep.subr.mxu0 %v283
      %327 = vmatpush1.msra.mxu0 %v282
      %328 = vmatprep.subr.mxu0 %v280
      %329 = vmatpush1.msra.mxu0 %v279
      %330 = vmatprep.subr.mxu0 %v277
      %331 = vmatpush1.msra.mxu0 %v276
      %332 = vmatprep.subr.mxu0 %v274
      %333 = vmatpush1.msra.mxu0 %v273
      %334 = vmatprep.subr.mxu0 0.0
      %335 = vmatpush2.msra.mxu0 0.0
      %336 = vmatprep.subr.mxu0 0.0
      %337 = vmatpush2.msra.mxu0 0.0
      %338 = vmatprep.subr.mxu0 0.0
      %339 = vmatpush2.msra.mxu0 0.0
      %340 = vmatprep.subr.mxu0 0.0
      %341 = vmatpush2.msra.mxu0 0.0
      %342 = vmatprep.subr.mxu0 0.0
      %343 = vmatpush2.msra.mxu0 0.0
      %344 = vmatprep.subr.mxu0 0.0
      %345 = vmatpush2.msra.mxu0 0.0
      %346 = vmatprep.subr.mxu0 0.0
      %347 = vmatpush2.msra.mxu0 0.0
      %348 = vmatprep.subr.mxu0 0.0
      %349 = vmatpush2.msra.mxu0 0.0
      %350 = vmatprep.subr.mxu0 0.0
      %351 = vmatpush2.msra.mxu0 0.0
      %352 = vmatprep.subr.mxu0 0.0
      %353 = vmatpush2.msra.mxu0 0.0
      %354 = vmatprep.subr.mxu0 0.0
      %355 = vmatpush2.msra.mxu0 0.0
      %356 = vmatprep.subr.mxu0 0.0
      %357 = vmatpush2.msra.mxu0 0.0
      %358 = vmatprep.subr.mxu0 0.0
      %359 = vmatpush2.msra.mxu0 0.0
      %360 = vmatprep.subr.mxu0 0.0
      %361 = vmatpush2.msra.mxu0 0.0
      %362 = vmatprep.subr.mxu0 0.0
      %363 = vmatpush2.msra.mxu0 0.0
      %364 = vmatprep.subr.mxu0 0.0
      %365 = vmatpush2.msra.mxu0 0.0
      %366 = vmatprep.mubr.f32.mxu0 0.0
      %367 = vmatmul.mubr.f32.gmra.mxu0 %v294
      %v368 = vpop.f32.mrf.mxu0
      %v369 = vadd.f32 %v290, %v368
      %v370 = vpop.f32.mrf.mxu0
      %v371 = vadd.f32 %v290, %v370
      %372 = vdwg.mxu0
      %373 = vmatprep.subr.mxu0 0.0
      %374 = vmatpush1.msra.mxu0 0.0
      %375 = vmatprep.subr.mxu0 0.0
      %376 = vmatpush1.msra.mxu0 0.0
      %377 = vmatprep.subr.mxu0 0.0
      %378 = vmatpush1.msra.mxu0 0.0
      %379 = vmatprep.subr.mxu0 0.0
      %380 = vmatpush1.msra.mxu0 0.0
      %381 = vmatprep.subr.mxu0 0.0
      %382 = vmatpush1.msra.mxu0 0.0
      %383 = vmatprep.subr.mxu0 0.0
      %384 = vmatpush1.msra.mxu0 0.0
      %385 = vmatprep.subr.mxu0 0.0
      %386 = vmatpush1.msra.mxu0 0.0
      %387 = vmatprep.subr.mxu0 0.0
      %388 = vmatpush1.msra.mxu0 0.0
      %389 = vmatprep.subr.mxu0 0.0
      %390 = vmatpush1.msra.mxu0 0.0
      %391 = vmatprep.subr.mxu0 0.0
      %392 = vmatpush1.msra.mxu0 0.0
      %393 = vmatprep.subr.mxu0 0.0
      %394 = vmatpush1.msra.mxu0 0.0
      %395 = vmatprep.subr.mxu0 0.0
      %396 = vmatpush1.msra.mxu0 %v300
      %397 = vmatprep.subr.mxu0 0.0
      %398 = vmatpush1.msra.mxu0 %v284
      %399 = vmatprep.subr.mxu0 0.0
      %400 = vmatpush1.msra.mxu0 %v281
      %401 = vmatprep.subr.mxu0 0.0
      %402 = vmatpush1.msra.mxu0 %v278
      %403 = vmatprep.subr.mxu0 0.0
      %404 = vmatpush1.msra.mxu0 %v275
      %405 = vmatprep.subr.mxu0 0.0
      %406 = vmatpush2.msra.mxu0 0.0
      %407 = vmatprep.subr.mxu0 0.0
      %408 = vmatpush2.msra.mxu0 0.0
      %409 = vmatprep.subr.mxu0 0.0
      %410 = vmatpush2.msra.mxu0 0.0
      %411 = vmatprep.subr.mxu0 0.0
      %412 = vmatpush2.msra.mxu0 0.0
      %413 = vmatprep.subr.mxu0 0.0
      %414 = vmatpush2.msra.mxu0 0.0
      %415 = vmatprep.subr.mxu0 0.0
      %416 = vmatpush2.msra.mxu0 0.0
      %417 = vmatprep.subr.mxu0 0.0
      %418 = vmatpush2.msra.mxu0 0.0
      %419 = vmatprep.subr.mxu0 0.0
      %420 = vmatpush2.msra.mxu0 0.0
      %421 = vmatprep.subr.mxu0 0.0
      %422 = vmatpush2.msra.mxu0 0.0
      %423 = vmatprep.subr.mxu0 0.0
      %424 = vmatpush2.msra.mxu0 0.0
      %425 = vmatprep.subr.mxu0 0.0
      %426 = vmatpush2.msra.mxu0 0.0
      %427 = vmatprep.subr.mxu0 0.0
      %428 = vmatpush2.msra.mxu0 0.0
      %429 = vmatprep.subr.mxu0 0.0
      %430 = vmatpush2.msra.mxu0 0.0
      %431 = vmatprep.subr.mxu0 0.0
      %432 = vmatpush2.msra.mxu0 0.0
      %433 = vmatprep.subr.mxu0 0.0
      %434 = vmatpush2.msra.mxu0 0.0
      %435 = vmatprep.subr.mxu0 0.0
      %436 = vmatpush2.msra.mxu0 0.0
      %437 = vmatprep.mubr.f32.mxu0 0.0
      %438 = vmatmul.mubr.f32.gmra.mxu0 %v294
      %v439 = vpop.f32.mrf.mxu0
      %v440 = vadd.f32 %v290, %v439
      %v441 = vpop.f32.mrf.mxu0
      %442 = vdwg.mxu0
      %v443 = vmax.f32 %v369, 0.0
      %v444 = vmax.f32 %v371, 0.0
      %v445 = vmax.f32 %v440, 0.0
      %446 = vst [vmem:[%s170] sm:$0xff] %v443
      %447 = vst [vmem:[%s170 + $0x8] sm:$0xff] %v444
      %vm448 = vcmask 261120
      %449 = vst.msk [vmem:[%s170 + $0x10] sm:$0xff] %vm448, %v445
      %p450 = scmp.lt.s32.totalorder %s14, 1
      %s451 = scalar_select %p450, %s14, 1
      %s452 = smul.addr %s451, 3
      %s453 = smul.addr %s452, 8
      %s454 = scalar_lea.vmem %s3, %s453
      // Predicated region
      $region33: #{conv_layer_forward.1} parent=31 // pred_check
        %p455 = pneg %p100
      $region34: #{conv_layer_forward.1} parent=31 // pred_check_branch
        %457 = sbr.rel (%p455) target = $region36
      $region35: #{conv_layer_forward.1} parent=31 // pred_region
        _
      $region36: #{conv_layer_forward.1} parent=31 // pred_fallthru
        _
    $region32: #{conv_layer_forward.1} parent=5 // pred_fallthru
      _
    %p458 = scmp.le.s32.totalorder 2, %s9
    // Predicated region
    $region37: #{conv_layer_forward.1} parent=5 // pred_check
      %p459 = pneg %p458
    $region38: #{conv_layer_forward.1} parent=5 // pred_check_branch
      %461 = sbr.rel (%p459) target = $region40
    $region39: #{conv_layer_forward.1} parent=5 // pred_region
      %s462 = ssub.s32 %s9, 2
      // Predicated region
      $region41: #{conv_layer_forward.1} parent=39 // pred_check
        %p463 = pneg %p106
      $region42: #{conv_layer_forward.1} parent=39 // pred_check_branch
        %465 = sbr.rel (%p463) target = $region44
      $region43: #{conv_layer_forward.1} parent=39 // pred_region
        %p466 = scmp.lt.s32.totalorder %s15, 1
        %s467 = scalar_select %p466, %s15, 1
        %s468 = smul.addr %s467, 3
        %s469 = smul.addr %s468, 8
        %s470 = scalar_lea.vmem %s3, %s469
      $region44: #{conv_layer_forward.1} parent=39 // pred_fallthru
        _
    $region40: #{conv_layer_forward.1} parent=5 // pred_fallthru
      _
  $region6: #{conv_layer_forward.1} parent=0 // loop_footer
    %s13 = sadd.s32 1, %s9
  $region7: #{conv_layer_forward.1} parent=0 // loop_footer_branch
    %8 = sbr.rel target = $region3
  $region8: #{conv_layer_forward.1} parent=0 // loop_exit
    _

</llo_original>
